<compile_context>
chip_gen: v6e
topology: v6e:2x2x1
jax: 0.10.0
libtpu: 0.0.40
codegen_flags: <defaults>
</compile_context>

<pallas_src>
import numpy as np
import jax
import jax.numpy as jnp
from jax import lax
from jax.experimental import pallas as pl
from jax.experimental.pallas import tpu as pltpu


def _round_up(x, mult):
    return ((x + mult - 1) // mult) * mult


def _tf_mcp_kernel(c_ref, g_ref, dmat_ref, thr_ref, gam_ref, x_ref):
    """Runs the full TF-MCP iteration loop in a single invocation.

    c_ref    : (Bp, Pp)  loop-invariant   c = (y @ W.T) @ D.T   (zero padded)
    g_ref    : (Np, Pp)  loop-invariant   G = S.T @ D.T         (zero padded)
    dmat_ref : (Pp, Np)  dictionary D                           (zero padded)
    thr_ref  : (1, 1)    SMEM scalar threshold
    gam_ref  : (1, 1)    SMEM scalar MCP gamma
    x_ref    : (numIter, Bp, Np) stacked iterates d_1 .. d_numIter
    """
    # Read scalars once, off the vector critical path.
    thr = thr_ref[0, 0]
    gam = gam_ref[0, 0]
    big_t = thr * gam
    inv_gm1 = 1.0 / (gam - 1.0)
    gam_gm1 = gam * inv_gm1

    c = c_ref[...]
    g_mat = g_ref[...]
    d_mat = dmat_ref[...]
    num_iter = x_ref.shape[0]

    def firm_thr(u):
        return (inv_gm1 * jnp.maximum(-u - big_t, 0.0)
                - gam_gm1 * jnp.maximum(-u - thr, 0.0)
                + gam_gm1 * jnp.maximum(u - thr, 0.0)
                - inv_gm1 * jnp.maximum(u - big_t, 0.0))

    # Iteration 1: d = 0, so u = c (the d @ G matmul is skipped entirely).
    d = jnp.dot(firm_thr(c), d_mat, preferred_element_type=jnp.float32)
    x_ref[0] = d

    # Remaining iterations: u = d @ G + c ; d = firm_thr(u) @ D.
    def body(i, d_carry):
        u = jnp.dot(d_carry, g_mat, preferred_element_type=jnp.float32) + c
        d_new = jnp.dot(firm_thr(u), d_mat, preferred_element_type=jnp.float32)
        x_ref[i] = d_new
        return d_new

    lax.fori_loop(1, num_iter, body, d, unroll=True)


def a_tf_mcp_forward(y, W, S, D, thr, gam, num_iter):
    """Pallas equivalent of a_TF_MCP_model.forward (after weights_init).

    Returns (x, time_list) where x is a list of numIter+1 arrays (B, n).
    """
    import time as _time

    B, m = y.shape
    n = S.shape[0]
    p = D.shape[0]

    y = jnp.asarray(y, jnp.float32)
    W = jnp.asarray(W, jnp.float32)   # (n, m)
    S = jnp.asarray(S, jnp.float32)   # (n, n)
    D = jnp.asarray(D, jnp.float32)   # (p, n)

    # Loop-invariant precompute (hoisted + algebraically fused):
    #   u = z @ D.T = d @ (S.T @ D.T) + (y @ W.T) @ D.T = d @ G + c
    hp = "highest"
    c = jnp.dot(jnp.dot(y, W.T, precision=hp), D.T, precision=hp)   # (B, p)
    G = jnp.dot(S.T, D.T, precision=hp)                             # (n, p)

    # Pad to vreg/MXU-friendly shapes (lanes multiple of 128, sublanes of 8)
    # so matmuls are lane-dense and the output store is an unmasked vst.
    # Zero padding is exact since firm_thr(0) = 0.
    Bp = _round_up(B, 8)
    Np = _round_up(n, 128)
    Pp = _round_up(p, 128)

    c_p = jnp.zeros((Bp, Pp), jnp.float32).at[:B, :p].set(c)
    G_p = jnp.zeros((Np, Pp), jnp.float32).at[:n, :p].set(G)
    D_p = jnp.zeros((Pp, Np), jnp.float32).at[:p, :n].set(D)
    thr_arr = jnp.full((1, 1), thr, jnp.float32)
    gam_arr = jnp.full((1, 1), gam, jnp.float32)

    flops = int(num_iter) * 4 * Bp * Np * Pp
    bytes_accessed = 4 * (c_p.size + G_p.size + D_p.size + num_iter * Bp * Np)

    vmem_spec = pl.BlockSpec(memory_space=pltpu.MemorySpace.VMEM)
    smem_spec = pl.BlockSpec(memory_space=pltpu.MemorySpace.SMEM)

    start = _time.time()
    x_all = pl.pallas_call(
        _tf_mcp_kernel,
        out_shape=jax.ShapeDtypeStruct((num_iter, Bp, Np), jnp.float32),
        in_specs=[vmem_spec, vmem_spec, vmem_spec, smem_spec, smem_spec],
        out_specs=pl.BlockSpec(memory_space=pltpu.MemorySpace.VMEM),
        cost_estimate=pl.CostEstimate(flops=flops, transcendentals=0,
                                      bytes_accessed=bytes_accessed),
    )(c_p, G_p, D_p, thr_arr, gam_arr)
    x_all = jax.block_until_ready(x_all)
    elapsed = _time.time() - start

    d0 = jnp.zeros((B, n), jnp.float32)
    x = [d0] + [x_all[i, :B, :n] for i in range(num_iter)]
    # time_list in the PyTorch forward is host wall-clock glue, not compute;
    # a single fused kernel cannot observe per-iteration host timestamps.
    time_list = [elapsed for _ in range(num_iter)]
    return x, time_list


def _reference_forward(y, W, S, D, thr, gam, num_iter):
    """Plain-JAX reference mirroring the PyTorch forward exactly (unfused)."""
    hp = "highest"
    B = y.shape[0]
    n = S.shape[0]
    big_t = thr * gam
    d = jnp.zeros((B, n), jnp.float32)
    xs = [d]
    for _ in range(num_iter):
        z = jnp.dot(d, S.T, precision=hp) + jnp.dot(y, W.T, precision=hp)
        u = jnp.dot(z, D.T, precision=hp)
        v = (1.0 / (gam - 1.0) * jnp.maximum(-u - big_t, 0.0)
             - gam / (gam - 1.0) * jnp.maximum(-u - thr, 0.0)
             + gam / (gam - 1.0) * jnp.maximum(u - thr, 0.0)
             - 1.0 / (gam - 1.0) * jnp.maximum(u - big_t, 0.0))
        d = jnp.dot(v, D, precision=hp)
        xs.append(d)
    return xs


if __name__ == "__main__":
    # Small, deterministic setup (plays the role of __init__ / weights_init).
    B, m, n, p = 4, 16, 32, 32
    num_iter = 5
    thr_ = 0.1
    gam_ = 3.0

    key = jax.random.PRNGKey(0)
    k_a, k_d, k_y = jax.random.split(key, 3)
    A = jax.random.normal(k_a, (m, n), jnp.float32) * 0.1      # measurement matrix
    Dmat = jax.random.normal(k_d, (p, n), jnp.float32) * 0.05  # dictionary D (p, n)
    y = jax.random.normal(k_y, (B, m), jnp.float32)

    # weights_init: alpha = 1 (hard-coded in the PyTorch weights_init),
    # S = I - pinv(A) @ A, W = pinv(A), thr = thr_/alpha, gam = gam_.
    A_np = np.asarray(A, np.float64)
    Ainv = np.linalg.pinv(A_np).astype(np.float32)              # (n, m)
    S = jnp.asarray(np.eye(n, dtype=np.float32)
                    - Ainv @ A_np.astype(np.float32), jnp.float32)
    W = jnp.asarray(Ainv, jnp.float32)
    thr = thr_ / 1.0
    gam = gam_

    x, time_list = a_tf_mcp_forward(y, W, S, Dmat, thr, gam, num_iter)
    jax.block_until_ready(x[-1])

    x_ref = _reference_forward(y, W, S, Dmat, thr, gam, num_iter)
    for got, want in zip(x, x_ref):
        np.testing.assert_allclose(np.asarray(got), np.asarray(want),
                                   rtol=1e-4, atol=1e-4)

    print("KERNEL_OK")
</pallas_src>

<mosaic_0001>
module attributes {stable_mosaic.version = 11 : i64} {
  func.func @_tf_mcp_kernel(%arg0: memref<8x128xf32, #tpu.memory_space<vmem>>, %arg1: memref<128x128xf32, #tpu.memory_space<vmem>>, %arg2: memref<128x128xf32, #tpu.memory_space<vmem>>, %arg3: memref<1x1xf32, #tpu.memory_space<smem>>, %arg4: memref<1x1xf32, #tpu.memory_space<smem>>, %arg5: memref<5x8x128xf32, #tpu.memory_space<vmem>>) attributes {dimension_semantics = [], scalar_prefetch = 0 : i64, scratch_operands = 0 : i64, tpu.core_type = #tpu.core_type<tc>} {
    %c0 = arith.constant 0 : index
    %c0_0 = arith.constant 0 : index
    %0 = memref.load %arg3[%c0, %c0_0] : memref<1x1xf32, #tpu.memory_space<smem>>
    %c0_1 = arith.constant 0 : index
    %c0_2 = arith.constant 0 : index
    %1 = memref.load %arg4[%c0_1, %c0_2] : memref<1x1xf32, #tpu.memory_space<smem>>
    %2 = arith.mulf %0, %1 : f32
    %cst = arith.constant 1.000000e+00 : f32
    %3 = arith.subf %1, %cst : f32
    %cst_3 = arith.constant 1.000000e+00 : f32
    %4 = arith.divf %cst_3, %3 : f32
    %5 = arith.mulf %1, %4 : f32
    %c0_4 = arith.constant 0 : index
    %c0_5 = arith.constant 0 : index
    %6 = vector.load %arg0[%c0_4, %c0_5] : memref<8x128xf32, #tpu.memory_space<vmem>>, vector<8x128xf32>
    %c0_6 = arith.constant 0 : index
    %c0_7 = arith.constant 0 : index
    %7 = vector.load %arg1[%c0_6, %c0_7] : memref<128x128xf32, #tpu.memory_space<vmem>>, vector<128x128xf32>
    %c0_8 = arith.constant 0 : index
    %c0_9 = arith.constant 0 : index
    %8 = vector.load %arg2[%c0_8, %c0_9] : memref<128x128xf32, #tpu.memory_space<vmem>>, vector<128x128xf32>
    %cst_10 = arith.constant 0.000000e+00 : f32
    %9 = vector.broadcast %cst_10 : f32 to vector<8x128xf32>
    %10 = arith.subf %9, %6 : vector<8x128xf32>
    %11 = vector.broadcast %2 : f32 to vector<8x128xf32>
    %12 = arith.subf %10, %11 : vector<8x128xf32>
    %cst_11 = arith.constant 0.000000e+00 : f32
    %13 = vector.broadcast %cst_11 : f32 to vector<8x128xf32>
    %14 = arith.maximumf %12, %13 : vector<8x128xf32>
    %15 = vector.broadcast %4 : f32 to vector<8x128xf32>
    %16 = arith.mulf %15, %14 : vector<8x128xf32>
    %cst_12 = arith.constant 0.000000e+00 : f32
    %17 = vector.broadcast %cst_12 : f32 to vector<8x128xf32>
    %18 = arith.subf %17, %6 : vector<8x128xf32>
    %19 = vector.broadcast %0 : f32 to vector<8x128xf32>
    %20 = arith.subf %18, %19 : vector<8x128xf32>
    %cst_13 = arith.constant 0.000000e+00 : f32
    %21 = vector.broadcast %cst_13 : f32 to vector<8x128xf32>
    %22 = arith.maximumf %20, %21 : vector<8x128xf32>
    %23 = vector.broadcast %5 : f32 to vector<8x128xf32>
    %24 = arith.mulf %23, %22 : vector<8x128xf32>
    %25 = arith.subf %16, %24 : vector<8x128xf32>
    %26 = vector.broadcast %0 : f32 to vector<8x128xf32>
    %27 = arith.subf %6, %26 : vector<8x128xf32>
    %cst_14 = arith.constant 0.000000e+00 : f32
    %28 = vector.broadcast %cst_14 : f32 to vector<8x128xf32>
    %29 = arith.maximumf %27, %28 : vector<8x128xf32>
    %30 = vector.broadcast %5 : f32 to vector<8x128xf32>
    %31 = arith.mulf %30, %29 : vector<8x128xf32>
    %32 = arith.addf %25, %31 : vector<8x128xf32>
    %33 = vector.broadcast %2 : f32 to vector<8x128xf32>
    %34 = arith.subf %6, %33 : vector<8x128xf32>
    %cst_15 = arith.constant 0.000000e+00 : f32
    %35 = vector.broadcast %cst_15 : f32 to vector<8x128xf32>
    %36 = arith.maximumf %34, %35 : vector<8x128xf32>
    %37 = vector.broadcast %4 : f32 to vector<8x128xf32>
    %38 = arith.mulf %37, %36 : vector<8x128xf32>
    %39 = arith.subf %32, %38 : vector<8x128xf32>
    %cst_16 = arith.constant dense<0.000000e+00> : vector<8x128xf32>
    %40 = tpu.matmul %39, %8, %cst_16 {dimension_numbers = #tpu.dot_dimension_numbers<[1], [0], [0], [1], [0, 0, 1, 1], [], []>} : vector<8x128xf32>, vector<128x128xf32>, vector<8x128xf32> -> vector<8x128xf32>
    %c0_17 = arith.constant 0 : index
    %c0_18 = arith.constant 0 : index
    %c0_19 = arith.constant 0 : index
    %41 = vector.load %arg5[%c0_17, %c0_18, %c0_19] : memref<5x8x128xf32, #tpu.memory_space<vmem>>, vector<1x8x128xf32>
    %42 = vector.shape_cast %41 : vector<1x8x128xf32> to vector<8x128xf32>
    %43 = vector.shape_cast %40 : vector<8x128xf32> to vector<1x8x128xf32>
    tpu.vector_store %arg5[%c0_17, %c0_18, %c0_19], %43 {strides = array<i32>} : memref<5x8x128xf32, #tpu.memory_space<vmem>>, vector<1x8x128xf32>,
    %c1_i32 = arith.constant 1 : i32
    %cst_20 = arith.constant dense<0.000000e+00> : vector<8x128xf32>
    %44 = tpu.matmul %40, %7, %cst_20 {dimension_numbers = #tpu.dot_dimension_numbers<[1], [0], [0], [1], [0, 0, 1, 1], [], []>} : vector<8x128xf32>, vector<128x128xf32>, vector<8x128xf32> -> vector<8x128xf32>
    %45 = arith.addf %44, %6 : vector<8x128xf32>
    %cst_21 = arith.constant 0.000000e+00 : f32
    %46 = vector.broadcast %cst_21 : f32 to vector<8x128xf32>
    %47 = arith.subf %46, %45 : vector<8x128xf32>
    %48 = vector.broadcast %2 : f32 to vector<8x128xf32>
    %49 = arith.subf %47, %48 : vector<8x128xf32>
    %cst_22 = arith.constant 0.000000e+00 : f32
    %50 = vector.broadcast %cst_22 : f32 to vector<8x128xf32>
    %51 = arith.maximumf %49, %50 : vector<8x128xf32>
    %52 = vector.broadcast %4 : f32 to vector<8x128xf32>
    %53 = arith.mulf %52, %51 : vector<8x128xf32>
    %cst_23 = arith.constant 0.000000e+00 : f32
    %54 = vector.broadcast %cst_23 : f32 to vector<8x128xf32>
    %55 = arith.subf %54, %45 : vector<8x128xf32>
    %56 = vector.broadcast %0 : f32 to vector<8x128xf32>
    %57 = arith.subf %55, %56 : vector<8x128xf32>
    %cst_24 = arith.constant 0.000000e+00 : f32
    %58 = vector.broadcast %cst_24 : f32 to vector<8x128xf32>
    %59 = arith.maximumf %57, %58 : vector<8x128xf32>
    %60 = vector.broadcast %5 : f32 to vector<8x128xf32>
    %61 = arith.mulf %60, %59 : vector<8x128xf32>
    %62 = arith.subf %53, %61 : vector<8x128xf32>
    %63 = vector.broadcast %0 : f32 to vector<8x128xf32>
    %64 = arith.subf %45, %63 : vector<8x128xf32>
    %cst_25 = arith.constant 0.000000e+00 : f32
    %65 = vector.broadcast %cst_25 : f32 to vector<8x128xf32>
    %66 = arith.maximumf %64, %65 : vector<8x128xf32>
    %67 = vector.broadcast %5 : f32 to vector<8x128xf32>
    %68 = arith.mulf %67, %66 : vector<8x128xf32>
    %69 = arith.addf %62, %68 : vector<8x128xf32>
    %70 = vector.broadcast %2 : f32 to vector<8x128xf32>
    %71 = arith.subf %45, %70 : vector<8x128xf32>
    %cst_26 = arith.constant 0.000000e+00 : f32
    %72 = vector.broadcast %cst_26 : f32 to vector<8x128xf32>
    %73 = arith.maximumf %71, %72 : vector<8x128xf32>
    %74 = vector.broadcast %4 : f32 to vector<8x128xf32>
    %75 = arith.mulf %74, %73 : vector<8x128xf32>
    %76 = arith.subf %69, %75 : vector<8x128xf32>
    %cst_27 = arith.constant dense<0.000000e+00> : vector<8x128xf32>
    %77 = tpu.matmul %76, %8, %cst_27 {dimension_numbers = #tpu.dot_dimension_numbers<[1], [0], [0], [1], [0, 0, 1, 1], [], []>} : vector<8x128xf32>, vector<128x128xf32>, vector<8x128xf32> -> vector<8x128xf32>
    %78 = arith.index_cast %c1_i32 : i32 to index
    %c0_28 = arith.constant 0 : index
    %c0_29 = arith.constant 0 : index
    %79 = vector.load %arg5[%78, %c0_28, %c0_29] : memref<5x8x128xf32, #tpu.memory_space<vmem>>, vector<1x8x128xf32>
    %80 = vector.shape_cast %79 : vector<1x8x128xf32> to vector<8x128xf32>
    %81 = vector.shape_cast %77 : vector<8x128xf32> to vector<1x8x128xf32>
    tpu.vector_store %arg5[%78, %c0_28, %c0_29], %81 {strides = array<i32>} : memref<5x8x128xf32, #tpu.memory_space<vmem>>, vector<1x8x128xf32>,
    %c2_i32 = arith.constant 2 : i32
    %cst_30 = arith.constant dense<0.000000e+00> : vector<8x128xf32>
    %82 = tpu.matmul %77, %7, %cst_30 {dimension_numbers = #tpu.dot_dimension_numbers<[1], [0], [0], [1], [0, 0, 1, 1], [], []>} : vector<8x128xf32>, vector<128x128xf32>, vector<8x128xf32> -> vector<8x128xf32>
    %83 = arith.addf %82, %6 : vector<8x128xf32>
    %cst_31 = arith.constant 0.000000e+00 : f32
    %84 = vector.broadcast %cst_31 : f32 to vector<8x128xf32>
    %85 = arith.subf %84, %83 : vector<8x128xf32>
    %86 = vector.broadcast %2 : f32 to vector<8x128xf32>
    %87 = arith.subf %85, %86 : vector<8x128xf32>
    %cst_32 = arith.constant 0.000000e+00 : f32
    %88 = vector.broadcast %cst_32 : f32 to vector<8x128xf32>
    %89 = arith.maximumf %87, %88 : vector<8x128xf32>
    %90 = vector.broadcast %4 : f32 to vector<8x128xf32>
    %91 = arith.mulf %90, %89 : vector<8x128xf32>
    %cst_33 = arith.constant 0.000000e+00 : f32
    %92 = vector.broadcast %cst_33 : f32 to vector<8x128xf32>
    %93 = arith.subf %92, %83 : vector<8x128xf32>
    %94 = vector.broadcast %0 : f32 to vector<8x128xf32>
    %95 = arith.subf %93, %94 : vector<8x128xf32>
    %cst_34 = arith.constant 0.000000e+00 : f32
    %96 = vector.broadcast %cst_34 : f32 to vector<8x128xf32>
    %97 = arith.maximumf %95, %96 : vector<8x128xf32>
    %98 = vector.broadcast %5 : f32 to vector<8x128xf32>
    %99 = arith.mulf %98, %97 : vector<8x128xf32>
    %100 = arith.subf %91, %99 : vector<8x128xf32>
    %101 = vector.broadcast %0 : f32 to vector<8x128xf32>
    %102 = arith.subf %83, %101 : vector<8x128xf32>
    %cst_35 = arith.constant 0.000000e+00 : f32
    %103 = vector.broadcast %cst_35 : f32 to vector<8x128xf32>
    %104 = arith.maximumf %102, %103 : vector<8x128xf32>
    %105 = vector.broadcast %5 : f32 to vector<8x128xf32>
    %106 = arith.mulf %105, %104 : vector<8x128xf32>
    %107 = arith.addf %100, %106 : vector<8x128xf32>
    %108 = vector.broadcast %2 : f32 to vector<8x128xf32>
    %109 = arith.subf %83, %108 : vector<8x128xf32>
    %cst_36 = arith.constant 0.000000e+00 : f32
    %110 = vector.broadcast %cst_36 : f32 to vector<8x128xf32>
    %111 = arith.maximumf %109, %110 : vector<8x128xf32>
    %112 = vector.broadcast %4 : f32 to vector<8x128xf32>
    %113 = arith.mulf %112, %111 : vector<8x128xf32>
    %114 = arith.subf %107, %113 : vector<8x128xf32>
    %cst_37 = arith.constant dense<0.000000e+00> : vector<8x128xf32>
    %115 = tpu.matmul %114, %8, %cst_37 {dimension_numbers = #tpu.dot_dimension_numbers<[1], [0], [0], [1], [0, 0, 1, 1], [], []>} : vector<8x128xf32>, vector<128x128xf32>, vector<8x128xf32> -> vector<8x128xf32>
    %116 = arith.index_cast %c2_i32 : i32 to index
    %c0_38 = arith.constant 0 : index
    %c0_39 = arith.constant 0 : index
    %117 = vector.load %arg5[%116, %c0_38, %c0_39] : memref<5x8x128xf32, #tpu.memory_space<vmem>>, vector<1x8x128xf32>
    %118 = vector.shape_cast %117 : vector<1x8x128xf32> to vector<8x128xf32>
    %119 = vector.shape_cast %115 : vector<8x128xf32> to vector<1x8x128xf32>
    tpu.vector_store %arg5[%116, %c0_38, %c0_39], %119 {strides = array<i32>} : memref<5x8x128xf32, #tpu.memory_space<vmem>>, vector<1x8x128xf32>,
    %c3_i32 = arith.constant 3 : i32
    %cst_40 = arith.constant dense<0.000000e+00> : vector<8x128xf32>
    %120 = tpu.matmul %115, %7, %cst_40 {dimension_numbers = #tpu.dot_dimension_numbers<[1], [0], [0], [1], [0, 0, 1, 1], [], []>} : vector<8x128xf32>, vector<128x128xf32>, vector<8x128xf32> -> vector<8x128xf32>
    %121 = arith.addf %120, %6 : vector<8x128xf32>
    %cst_41 = arith.constant 0.000000e+00 : f32
    %122 = vector.broadcast %cst_41 : f32 to vector<8x128xf32>
    %123 = arith.subf %122, %121 : vector<8x128xf32>
    %124 = vector.broadcast %2 : f32 to vector<8x128xf32>
    %125 = arith.subf %123, %124 : vector<8x128xf32>
    %cst_42 = arith.constant 0.000000e+00 : f32
    %126 = vector.broadcast %cst_42 : f32 to vector<8x128xf32>
    %127 = arith.maximumf %125, %126 : vector<8x128xf32>
    %128 = vector.broadcast %4 : f32 to vector<8x128xf32>
    %129 = arith.mulf %128, %127 : vector<8x128xf32>
    %cst_43 = arith.constant 0.000000e+00 : f32
    %130 = vector.broadcast %cst_43 : f32 to vector<8x128xf32>
    %131 = arith.subf %130, %121 : vector<8x128xf32>
    %132 = vector.broadcast %0 : f32 to vector<8x128xf32>
    %133 = arith.subf %131, %132 : vector<8x128xf32>
    %cst_44 = arith.constant 0.000000e+00 : f32
    %134 = vector.broadcast %cst_44 : f32 to vector<8x128xf32>
    %135 = arith.maximumf %133, %134 : vector<8x128xf32>
    %136 = vector.broadcast %5 : f32 to vector<8x128xf32>
    %137 = arith.mulf %136, %135 : vector<8x128xf32>
    %138 = arith.subf %129, %137 : vector<8x128xf32>
    %139 = vector.broadcast %0 : f32 to vector<8x128xf32>
    %140 = arith.subf %121, %139 : vector<8x128xf32>
    %cst_45 = arith.constant 0.000000e+00 : f32
    %141 = vector.broadcast %cst_45 : f32 to vector<8x128xf32>
    %142 = arith.maximumf %140, %141 : vector<8x128xf32>
    %143 = vector.broadcast %5 : f32 to vector<8x128xf32>
    %144 = arith.mulf %143, %142 : vector<8x128xf32>
    %145 = arith.addf %138, %144 : vector<8x128xf32>
    %146 = vector.broadcast %2 : f32 to vector<8x128xf32>
    %147 = arith.subf %121, %146 : vector<8x128xf32>
    %cst_46 = arith.constant 0.000000e+00 : f32
    %148 = vector.broadcast %cst_46 : f32 to vector<8x128xf32>
    %149 = arith.maximumf %147, %148 : vector<8x128xf32>
    %150 = vector.broadcast %4 : f32 to vector<8x128xf32>
    %151 = arith.mulf %150, %149 : vector<8x128xf32>
    %152 = arith.subf %145, %151 : vector<8x128xf32>
    %cst_47 = arith.constant dense<0.000000e+00> : vector<8x128xf32>
    %153 = tpu.matmul %152, %8, %cst_47 {dimension_numbers = #tpu.dot_dimension_numbers<[1], [0], [0], [1], [0, 0, 1, 1], [], []>} : vector<8x128xf32>, vector<128x128xf32>, vector<8x128xf32> -> vector<8x128xf32>
    %154 = arith.index_cast %c3_i32 : i32 to index
    %c0_48 = arith.constant 0 : index
    %c0_49 = arith.constant 0 : index
    %155 = vector.load %arg5[%154, %c0_48, %c0_49] : memref<5x8x128xf32, #tpu.memory_space<vmem>>, vector<1x8x128xf32>
    %156 = vector.shape_cast %155 : vector<1x8x128xf32> to vector<8x128xf32>
    %157 = vector.shape_cast %153 : vector<8x128xf32> to vector<1x8x128xf32>
    tpu.vector_store %arg5[%154, %c0_48, %c0_49], %157 {strides = array<i32>} : memref<5x8x128xf32, #tpu.memory_space<vmem>>, vector<1x8x128xf32>,
    %c4_i32 = arith.constant 4 : i32
    %cst_50 = arith.constant dense<0.000000e+00> : vector<8x128xf32>
    %158 = tpu.matmul %153, %7, %cst_50 {dimension_numbers = #tpu.dot_dimension_numbers<[1], [0], [0], [1], [0, 0, 1, 1], [], []>} : vector<8x128xf32>, vector<128x128xf32>, vector<8x128xf32> -> vector<8x128xf32>
    %159 = arith.addf %158, %6 : vector<8x128xf32>
    %cst_51 = arith.constant 0.000000e+00 : f32
    %160 = vector.broadcast %cst_51 : f32 to vector<8x128xf32>
    %161 = arith.subf %160, %159 : vector<8x128xf32>
    %162 = vector.broadcast %2 : f32 to vector<8x128xf32>
    %163 = arith.subf %161, %162 : vector<8x128xf32>
    %cst_52 = arith.constant 0.000000e+00 : f32
    %164 = vector.broadcast %cst_52 : f32 to vector<8x128xf32>
    %165 = arith.maximumf %163, %164 : vector<8x128xf32>
    %166 = vector.broadcast %4 : f32 to vector<8x128xf32>
    %167 = arith.mulf %166, %165 : vector<8x128xf32>
    %cst_53 = arith.constant 0.000000e+00 : f32
    %168 = vector.broadcast %cst_53 : f32 to vector<8x128xf32>
    %169 = arith.subf %168, %159 : vector<8x128xf32>
    %170 = vector.broadcast %0 : f32 to vector<8x128xf32>
    %171 = arith.subf %169, %170 : vector<8x128xf32>
    %cst_54 = arith.constant 0.000000e+00 : f32
    %172 = vector.broadcast %cst_54 : f32 to vector<8x128xf32>
    %173 = arith.maximumf %171, %172 : vector<8x128xf32>
    %174 = vector.broadcast %5 : f32 to vector<8x128xf32>
    %175 = arith.mulf %174, %173 : vector<8x128xf32>
    %176 = arith.subf %167, %175 : vector<8x128xf32>
    %177 = vector.broadcast %0 : f32 to vector<8x128xf32>
    %178 = arith.subf %159, %177 : vector<8x128xf32>
    %cst_55 = arith.constant 0.000000e+00 : f32
    %179 = vector.broadcast %cst_55 : f32 to vector<8x128xf32>
    %180 = arith.maximumf %178, %179 : vector<8x128xf32>
    %181 = vector.broadcast %5 : f32 to vector<8x128xf32>
    %182 = arith.mulf %181, %180 : vector<8x128xf32>
    %183 = arith.addf %176, %182 : vector<8x128xf32>
    %184 = vector.broadcast %2 : f32 to vector<8x128xf32>
    %185 = arith.subf %159, %184 : vector<8x128xf32>
    %cst_56 = arith.constant 0.000000e+00 : f32
    %186 = vector.broadcast %cst_56 : f32 to vector<8x128xf32>
    %187 = arith.maximumf %185, %186 : vector<8x128xf32>
    %188 = vector.broadcast %4 : f32 to vector<8x128xf32>
    %189 = arith.mulf %188, %187 : vector<8x128xf32>
    %190 = arith.subf %183, %189 : vector<8x128xf32>
    %cst_57 = arith.constant dense<0.000000e+00> : vector<8x128xf32>
    %191 = tpu.matmul %190, %8, %cst_57 {dimension_numbers = #tpu.dot_dimension_numbers<[1], [0], [0], [1], [0, 0, 1, 1], [], []>} : vector<8x128xf32>, vector<128x128xf32>, vector<8x128xf32> -> vector<8x128xf32>
    %192 = arith.index_cast %c4_i32 : i32 to index
    %c0_58 = arith.constant 0 : index
    %c0_59 = arith.constant 0 : index
    %193 = vector.load %arg5[%192, %c0_58, %c0_59] : memref<5x8x128xf32, #tpu.memory_space<vmem>>, vector<1x8x128xf32>
    %194 = vector.shape_cast %193 : vector<1x8x128xf32> to vector<8x128xf32>
    %195 = vector.shape_cast %191 : vector<8x128xf32> to vector<1x8x128xf32>
    tpu.vector_store %arg5[%192, %c0_58, %c0_59], %195 {strides = array<i32>} : memref<5x8x128xf32, #tpu.memory_space<vmem>>, vector<1x8x128xf32>,
    %c4_i32_60 = arith.constant 4 : i32
    return
  }
}

</mosaic_0001>

<llo_original>
// kernel: tpu_custom_call.1
$region0: #{tpu_custom_call.1}
  #allocation0 [shape = 'u32[]', space=smem, size = 0x4, offset = 0x4, fixed_abs, tag = 'smem constant byte address 0x4 - core index']
  #allocation1 [shape = 'u32[144,128]{1,0:T(1,128)}', space=vmem, size = 0x12000, scoped, tag = 'internal scratch']
  #allocation2 [shape = 'f32[1,1]{1,0:T(1,128)S(6)}', space=smem, size = 0x200, scoped, tag = 'scoped memory for tpu_custom_call.1']
  #allocation3 [shape = 'f32[1,1]{1,0:T(1,128)S(6)}', space=smem, size = 0x200, scoped, tag = 'scoped memory for tpu_custom_call.1']
  %s0 = inlined_call_operand.hbm [shape: f32[8,128], index: 0, kind: input, shape index: {}]
  %s1 = inlined_call_operand.hbm [shape: f32[128,128], index: 1, kind: input, shape index: {}]
  %s2 = inlined_call_operand.hbm [shape: f32[128,128], index: 2, kind: input, shape index: {}]
  %s3 = inlined_call_operand.<no memory space> [shape: f32[1,1], index: 3, kind: input, shape index: {}]
  %s4 = inlined_call_operand.<no memory space> [shape: f32[1,1], index: 4, kind: input, shape index: {}]
  %s5 = inlined_call_operand.hbm [shape: f32[5,8,128], index: 5, kind: output, shape index: {}]
  %s6 = sld [smem:[#allocation0]]
  $region42: #{tpu_custom_call.1} parent=0
    _
  %s8 = ssub.s32 1, %s6
  %s9 = scalar_select 0, %s8, %s6
  %10 = sst [smem:[#allocation2]] %s3
  %11 = sst [smem:[#allocation3]] %s4
  $region1: #{tpu_custom_call.1} parent=0
    #allocation4 [shape = 'u8[4096]{0}', space=vmem, size = 0x1000, scoped, tag = 'input window, operand 0, single buffered']
    #allocation5 [shape = 's32[1]{0}', space=sflag, size = 0x4, scoped, tag = 'scoped memory for tpu_custom_call.1']
    #allocation6 [shape = 's32[1]{0}', space=sflag, size = 0x4, scoped, tag = 'scoped memory for tpu_custom_call.1']
    #allocation7 [shape = 'u8[65536]{0}', space=vmem, size = 0x10000, scoped, tag = 'input window, operand 1, single buffered']
    #allocation8 [shape = 's32[1]{0}', space=sflag, size = 0x4, scoped, tag = 'scoped memory for tpu_custom_call.1']
    #allocation9 [shape = 'u8[65536]{0}', space=vmem, size = 0x10000, scoped, tag = 'input window, operand 2, single buffered']
    #allocation10 [shape = 'u8[20480]{0}', space=vmem, size = 0x5000, scoped, tag = 'output window, operand 0, single buffered']
    %12 = vsyncpa [#allocation5], 0
    %13 = vsyncpa [#allocation8], 0
    %14 = vsyncpa [#allocation6], 0
    // Predicated region
    $region2: #{tpu_custom_call.1} parent=1 // pred_check
      _
    $region3: #{tpu_custom_call.1} parent=1 // pred_check_branch
      %16 = sbr.rel (0) target = $region5
    $region4: #{tpu_custom_call.1} parent=1 // pred_region
      %s18 = ssub.s32 128, 128
      %19 = vsyncadd [#allocation5], %s18
      %s21 = sshll.u32 [#allocation4], 4
      %s22 = int_to_ptr.vmem [resolvable:$true] %s21
      %24 = dma.hbm_to_vmem [thread:$0]  %s0, 128, %s22, [#allocation5]
    $region5: #{tpu_custom_call.1} parent=1 // pred_fallthru
      _
    // Predicated region
    $region6: #{tpu_custom_call.1} parent=1 // pred_check
      _
    $region7: #{tpu_custom_call.1} parent=1 // pred_check_branch
      %26 = sbr.rel (0) target = $region9
    $region8: #{tpu_custom_call.1} parent=1 // pred_region
      %s28 = ssub.s32 2048, 2048
      %29 = vsyncadd [#allocation8], %s28
      %s30 = sshll.u32 [#allocation7], 4
      %s31 = int_to_ptr.vmem [resolvable:$true] %s30
      %36 = dma.hbm_to_vmem [thread:$0]  %s1, 2048, %s31, [#allocation8], 128, 128, 8
    $region9: #{tpu_custom_call.1} parent=1 // pred_fallthru
      _
    // Predicated region
    $region10: #{tpu_custom_call.1} parent=1 // pred_check
      _
    $region11: #{tpu_custom_call.1} parent=1 // pred_check_branch
      %38 = sbr.rel (0) target = $region13
    $region12: #{tpu_custom_call.1} parent=1 // pred_region
      %s40 = ssub.s32 2048, 2048
      %41 = vsyncadd [#allocation8], %s40
      %s42 = sshll.u32 [#allocation9], 4
      %s43 = int_to_ptr.vmem [resolvable:$true] %s42
      %48 = dma.hbm_to_vmem [thread:$0]  %s2, 2048, %s43, [#allocation8], 128, 128, 8
    $region13: #{tpu_custom_call.1} parent=1 // pred_fallthru
      _
    // Predicated region
    $region14: #{tpu_custom_call.1} parent=1 // pred_check
      _
    $region15: #{tpu_custom_call.1} parent=1 // pred_check_branch
      %50 = sbr.rel (0) target = $region17
    $region16: #{tpu_custom_call.1} parent=1 // pred_region
      _
    $region17: #{tpu_custom_call.1} parent=1 // pred_fallthru
      _
    // Predicated region
    $region18: #{tpu_custom_call.1} parent=1 // pred_check
      _
    $region19: #{tpu_custom_call.1} parent=1 // pred_check_branch
      %52 = sbr.rel (0) target = $region21
    $region20: #{tpu_custom_call.1} parent=1 // pred_region
      _
    $region21: #{tpu_custom_call.1} parent=1 // pred_fallthru
      _
    // Predicated region
    $region22: #{tpu_custom_call.1} parent=1 // pred_check
      _
    $region23: #{tpu_custom_call.1} parent=1 // pred_check_branch
      %54 = sbr.rel (0) target = $region25
    $region24: #{tpu_custom_call.1} parent=1 // pred_region
      %55 = dma.done [#allocation5], 128
    $region25: #{tpu_custom_call.1} parent=1 // pred_fallthru
      _
    // Predicated region
    $region26: #{tpu_custom_call.1} parent=1 // pred_check
      _
    $region27: #{tpu_custom_call.1} parent=1 // pred_check_branch
      %57 = sbr.rel (0) target = $region29
    $region28: #{tpu_custom_call.1} parent=1 // pred_region
      %58 = dma.done [#allocation8], 2048
    $region29: #{tpu_custom_call.1} parent=1 // pred_fallthru
      _
    // Predicated region
    $region30: #{tpu_custom_call.1} parent=1 // pred_check
      _
    $region31: #{tpu_custom_call.1} parent=1 // pred_check_branch
      %60 = sbr.rel (0) target = $region33
    $region32: #{tpu_custom_call.1} parent=1 // pred_region
      %61 = dma.done [#allocation8], 2048
    $region33: #{tpu_custom_call.1} parent=1 // pred_fallthru
      _
    %s62 = sld [smem:[#allocation2]]
    %s63 = sld [smem:[#allocation3]]
    %s64 = smul.f32 %s62, %s63
    %s65 = ssub.f32 %s63, 1.0
    %v66 = vstv %s65
    %v67 = vrcp.pop %v66
    %s68 = vtos %v67
    %s69 = smul.f32 %s63, %s68
    %v70 = vld [vmem:[#allocation4] sm:$0xff]
    %v71 = vld [vmem:[#allocation7] sm:$0xff]
    %v72 = vld [vmem:[#allocation7 + $0x8] sm:$0xff]
    %v73 = vld [vmem:[#allocation7 + $0x10] sm:$0xff]
    %v74 = vld [vmem:[#allocation7 + $0x18] sm:$0xff]
    %v75 = vld [vmem:[#allocation7 + $0x20] sm:$0xff]
    %v76 = vld [vmem:[#allocation7 + $0x28] sm:$0xff]
    %v77 = vld [vmem:[#allocation7 + $0x30] sm:$0xff]
    %v78 = vld [vmem:[#allocation7 + $0x38] sm:$0xff]
    %v79 = vld [vmem:[#allocation7 + $0x40] sm:$0xff]
    %v80 = vld [vmem:[#allocation7 + $0x48] sm:$0xff]
    %v81 = vld [vmem:[#allocation7 + $0x50] sm:$0xff]
    %v82 = vld [vmem:[#allocation7 + $0x58] sm:$0xff]
    %v83 = vld [vmem:[#allocation7 + $0x60] sm:$0xff]
    %v84 = vld [vmem:[#allocation7 + $0x68] sm:$0xff]
    %v85 = vld [vmem:[#allocation7 + $0x70] sm:$0xff]
    %v86 = vld [vmem:[#allocation7 + $0x78] sm:$0xff]
    %v87 = vld [vmem:[#allocation9] sm:$0xff]
    %v88 = vld [vmem:[#allocation9 + $0x8] sm:$0xff]
    %v89 = vld [vmem:[#allocation9 + $0x10] sm:$0xff]
    %v90 = vld [vmem:[#allocation9 + $0x18] sm:$0xff]
    %v91 = vld [vmem:[#allocation9 + $0x20] sm:$0xff]
    %v92 = vld [vmem:[#allocation9 + $0x28] sm:$0xff]
    %v93 = vld [vmem:[#allocation9 + $0x30] sm:$0xff]
    %v94 = vld [vmem:[#allocation9 + $0x38] sm:$0xff]
    %v95 = vld [vmem:[#allocation9 + $0x40] sm:$0xff]
    %v96 = vld [vmem:[#allocation9 + $0x48] sm:$0xff]
    %v97 = vld [vmem:[#allocation9 + $0x50] sm:$0xff]
    %v98 = vld [vmem:[#allocation9 + $0x58] sm:$0xff]
    %v99 = vld [vmem:[#allocation9 + $0x60] sm:$0xff]
    %v100 = vld [vmem:[#allocation9 + $0x68] sm:$0xff]
    %v101 = vld [vmem:[#allocation9 + $0x70] sm:$0xff]
    %v102 = vld [vmem:[#allocation9 + $0x78] sm:$0xff]
    %v103 = vsub.f32 0.0, %v70
    %v104 = vstv %s64
    %v105 = vsub.f32 %v103, %v104
    %v106 = vmax.f32 %v105, 0.0
    %v107 = vstv %s68
    %v108 = vmul.f32 %v107, %v106
    %v109 = vstv %s62
    %v110 = vsub.f32 %v103, %v109
    %v111 = vmax.f32 %v110, 0.0
    %v112 = vstv %s69
    %v113 = vmul.f32 %v112, %v111
    %v114 = vsub.f32 %v108, %v113
    %v115 = vsub.f32 %v70, %v109
    %v116 = vmax.f32 %v115, 0.0
    %v117 = vmul.f32 %v112, %v116
    %v118 = vadd.f32 %v114, %v117
    %v119 = vsub.f32 %v70, %v104
    %v120 = vmax.f32 %v119, 0.0
    %v121 = vmul.f32 %v107, %v120
    %v122 = vsub.f32 %v118, %v121
    %123 = vmatprep.subr.mxu0 0.0
    %124 = vmatpush1.msra.mxu0 %v102
    %125 = vmatprep.subr.mxu0 0.0
    %126 = vmatpush1.msra.mxu0 %v101
    %127 = vmatprep.subr.mxu0 0.0
    %128 = vmatpush1.msra.mxu0 %v100
    %129 = vmatprep.subr.mxu0 0.0
    %130 = vmatpush1.msra.mxu0 %v99
    %131 = vmatprep.subr.mxu0 0.0
    %132 = vmatpush1.msra.mxu0 %v98
    %133 = vmatprep.subr.mxu0 0.0
    %134 = vmatpush1.msra.mxu0 %v97
    %135 = vmatprep.subr.mxu0 0.0
    %136 = vmatpush1.msra.mxu0 %v96
    %137 = vmatprep.subr.mxu0 0.0
    %138 = vmatpush1.msra.mxu0 %v95
    %139 = vmatprep.subr.mxu0 0.0
    %140 = vmatpush1.msra.mxu0 %v94
    %141 = vmatprep.subr.mxu0 0.0
    %142 = vmatpush1.msra.mxu0 %v93
    %143 = vmatprep.subr.mxu0 0.0
    %144 = vmatpush1.msra.mxu0 %v92
    %145 = vmatprep.subr.mxu0 0.0
    %146 = vmatpush1.msra.mxu0 %v91
    %147 = vmatprep.subr.mxu0 0.0
    %148 = vmatpush1.msra.mxu0 %v90
    %149 = vmatprep.subr.mxu0 0.0
    %150 = vmatpush1.msra.mxu0 %v89
    %151 = vmatprep.subr.mxu0 0.0
    %152 = vmatpush1.msra.mxu0 %v88
    %153 = vmatprep.subr.mxu0 0.0
    %154 = vmatpush1.msra.mxu0 %v87
    %155 = vmatprep.subr.mxu0 0.0
    %156 = vmatpush2.msra.mxu0 0.0
    %157 = vmatprep.subr.mxu0 0.0
    %158 = vmatpush2.msra.mxu0 0.0
    %159 = vmatprep.subr.mxu0 0.0
    %160 = vmatpush2.msra.mxu0 0.0
    %161 = vmatprep.subr.mxu0 0.0
    %162 = vmatpush2.msra.mxu0 0.0
    %163 = vmatprep.subr.mxu0 0.0
    %164 = vmatpush2.msra.mxu0 0.0
    %165 = vmatprep.subr.mxu0 0.0
    %166 = vmatpush2.msra.mxu0 0.0
    %167 = vmatprep.subr.mxu0 0.0
    %168 = vmatpush2.msra.mxu0 0.0
    %169 = vmatprep.subr.mxu0 0.0
    %170 = vmatpush2.msra.mxu0 0.0
    %171 = vmatprep.subr.mxu0 0.0
    %172 = vmatpush2.msra.mxu0 0.0
    %173 = vmatprep.subr.mxu0 0.0
    %174 = vmatpush2.msra.mxu0 0.0
    %175 = vmatprep.subr.mxu0 0.0
    %176 = vmatpush2.msra.mxu0 0.0
    %177 = vmatprep.subr.mxu0 0.0
    %178 = vmatpush2.msra.mxu0 0.0
    %179 = vmatprep.subr.mxu0 0.0
    %180 = vmatpush2.msra.mxu0 0.0
    %181 = vmatprep.subr.mxu0 0.0
    %182 = vmatpush2.msra.mxu0 0.0
    %183 = vmatprep.subr.mxu0 0.0
    %184 = vmatpush2.msra.mxu0 0.0
    %185 = vmatprep.subr.mxu0 0.0
    %186 = vmatpush2.msra.mxu0 0.0
    %187 = vmatprep.mubr.f32.mxu0 0.0
    %188 = vmatmul.mubr.f32.gmra.mxu0 %v122
    %v189 = vpop.f32.mrf.mxu0
    %v190 = vadd.f32 0.0, %v189
    %v191 = vpop.f32.mrf.mxu0
    %192 = vdwg.mxu0
    %193 = vst [vmem:[#allocation10] sm:$0xff] %v190
    %194 = vmatprep.subr.mxu0 0.0
    %195 = vmatpush1.msra.mxu0 %v86
    %196 = vmatprep.subr.mxu0 0.0
    %197 = vmatpush1.msra.mxu0 %v85
    %198 = vmatprep.subr.mxu0 0.0
    %199 = vmatpush1.msra.mxu0 %v84
    %200 = vmatprep.subr.mxu0 0.0
    %201 = vmatpush1.msra.mxu0 %v83
    %202 = vmatprep.subr.mxu0 0.0
    %203 = vmatpush1.msra.mxu0 %v82
    %204 = vmatprep.subr.mxu0 0.0
    %205 = vmatpush1.msra.mxu0 %v81
    %206 = vmatprep.subr.mxu0 0.0
    %207 = vmatpush1.msra.mxu0 %v80
    %208 = vmatprep.subr.mxu0 0.0
    %209 = vmatpush1.msra.mxu0 %v79
    %210 = vmatprep.subr.mxu0 0.0
    %211 = vmatpush1.msra.mxu0 %v78
    %212 = vmatprep.subr.mxu0 0.0
    %213 = vmatpush1.msra.mxu0 %v77
    %214 = vmatprep.subr.mxu0 0.0
    %215 = vmatpush1.msra.mxu0 %v76
    %216 = vmatprep.subr.mxu0 0.0
    %217 = vmatpush1.msra.mxu0 %v75
    %218 = vmatprep.subr.mxu0 0.0
    %219 = vmatpush1.msra.mxu0 %v74
    %220 = vmatprep.subr.mxu0 0.0
    %221 = vmatpush1.msra.mxu0 %v73
    %222 = vmatprep.subr.mxu0 0.0
    %223 = vmatpush1.msra.mxu0 %v72
    %224 = vmatprep.subr.mxu0 0.0
    %225 = vmatpush1.msra.mxu0 %v71
    %226 = vmatprep.subr.mxu0 0.0
    %227 = vmatpush2.msra.mxu0 0.0
    %228 = vmatprep.subr.mxu0 0.0
    %229 = vmatpush2.msra.mxu0 0.0
    %230 = vmatprep.subr.mxu0 0.0
    %231 = vmatpush2.msra.mxu0 0.0
    %232 = vmatprep.subr.mxu0 0.0
    %233 = vmatpush2.msra.mxu0 0.0
    %234 = vmatprep.subr.mxu0 0.0
    %235 = vmatpush2.msra.mxu0 0.0
    %236 = vmatprep.subr.mxu0 0.0
    %237 = vmatpush2.msra.mxu0 0.0
    %238 = vmatprep.subr.mxu0 0.0
    %239 = vmatpush2.msra.mxu0 0.0
    %240 = vmatprep.subr.mxu0 0.0
    %241 = vmatpush2.msra.mxu0 0.0
    %242 = vmatprep.subr.mxu0 0.0
    %243 = vmatpush2.msra.mxu0 0.0
    %244 = vmatprep.subr.mxu0 0.0
    %245 = vmatpush2.msra.mxu0 0.0
    %246 = vmatprep.subr.mxu0 0.0
    %247 = vmatpush2.msra.mxu0 0.0
    %248 = vmatprep.subr.mxu0 0.0
    %249 = vmatpush2.msra.mxu0 0.0
    %250 = vmatprep.subr.mxu0 0.0
    %251 = vmatpush2.msra.mxu0 0.0
    %252 = vmatprep.subr.mxu0 0.0
    %253 = vmatpush2.msra.mxu0 0.0
    %254 = vmatprep.subr.mxu0 0.0
    %255 = vmatpush2.msra.mxu0 0.0
    %256 = vmatprep.subr.mxu0 0.0
    %257 = vmatpush2.msra.mxu0 0.0
    %258 = vmatprep.mubr.f32.mxu0 0.0
    %259 = vmatmul.mubr.f32.gmra.mxu0 %v190
    %v260 = vpop.f32.mrf.mxu0
    %v261 = vadd.f32 %v70, %v260
    %v262 = vpop.f32.mrf.mxu0
    %263 = vdwg.mxu0
    %v264 = vsub.f32 0.0, %v261
    %v265 = vsub.f32 %v264, %v104
    %v266 = vmax.f32 %v265, 0.0
    %v267 = vmul.f32 %v107, %v266
    %v268 = vsub.f32 %v264, %v109
    %v269 = vmax.f32 %v268, 0.0
    %v270 = vmul.f32 %v112, %v269
    %v271 = vsub.f32 %v267, %v270
    %v272 = vsub.f32 %v261, %v109
    %v273 = vmax.f32 %v272, 0.0
    %v274 = vmul.f32 %v112, %v273
    %v275 = vadd.f32 %v271, %v274
    %v276 = vsub.f32 %v261, %v104
    %v277 = vmax.f32 %v276, 0.0
    %v278 = vmul.f32 %v107, %v277
    %v279 = vsub.f32 %v275, %v278
    %280 = vmatprep.subr.mxu0 0.0
    %281 = vmatpush1.msra.mxu0 %v102
    %282 = vmatprep.subr.mxu0 0.0
    %283 = vmatpush1.msra.mxu0 %v101
    %284 = vmatprep.subr.mxu0 0.0
    %285 = vmatpush1.msra.mxu0 %v100
    %286 = vmatprep.subr.mxu0 0.0
    %287 = vmatpush1.msra.mxu0 %v99
    %288 = vmatprep.subr.mxu0 0.0
    %289 = vmatpush1.msra.mxu0 %v98
    %290 = vmatprep.subr.mxu0 0.0
    %291 = vmatpush1.msra.mxu0 %v97
    %292 = vmatprep.subr.mxu0 0.0
    %293 = vmatpush1.msra.mxu0 %v96
    %294 = vmatprep.subr.mxu0 0.0
    %295 = vmatpush1.msra.mxu0 %v95
    %296 = vmatprep.subr.mxu0 0.0
    %297 = vmatpush1.msra.mxu0 %v94
    %298 = vmatprep.subr.mxu0 0.0
    %299 = vmatpush1.msra.mxu0 %v93
    %300 = vmatprep.subr.mxu0 0.0
    %301 = vmatpush1.msra.mxu0 %v92
    %302 = vmatprep.subr.mxu0 0.0
    %303 = vmatpush1.msra.mxu0 %v91
    %304 = vmatprep.subr.mxu0 0.0
    %305 = vmatpush1.msra.mxu0 %v90
    %306 = vmatprep.subr.mxu0 0.0
    %307 = vmatpush1.msra.mxu0 %v89
    %308 = vmatprep.subr.mxu0 0.0
    %309 = vmatpush1.msra.mxu0 %v88
    %310 = vmatprep.subr.mxu0 0.0
    %311 = vmatpush1.msra.mxu0 %v87
    %312 = vmatprep.subr.mxu0 0.0
    %313 = vmatpush2.msra.mxu0 0.0
    %314 = vmatprep.subr.mxu0 0.0
    %315 = vmatpush2.msra.mxu0 0.0
    %316 = vmatprep.subr.mxu0 0.0
    %317 = vmatpush2.msra.mxu0 0.0
    %318 = vmatprep.subr.mxu0 0.0
    %319 = vmatpush2.msra.mxu0 0.0
    %320 = vmatprep.subr.mxu0 0.0
    %321 = vmatpush2.msra.mxu0 0.0
    %322 = vmatprep.subr.mxu0 0.0
    %323 = vmatpush2.msra.mxu0 0.0
    %324 = vmatprep.subr.mxu0 0.0
    %325 = vmatpush2.msra.mxu0 0.0
    %326 = vmatprep.subr.mxu0 0.0
    %327 = vmatpush2.msra.mxu0 0.0
    %328 = vmatprep.subr.mxu0 0.0
    %329 = vmatpush2.msra.mxu0 0.0
    %330 = vmatprep.subr.mxu0 0.0
    %331 = vmatpush2.msra.mxu0 0.0
    %332 = vmatprep.subr.mxu0 0.0
    %333 = vmatpush2.msra.mxu0 0.0
    %334 = vmatprep.subr.mxu0 0.0
    %335 = vmatpush2.msra.mxu0 0.0
    %336 = vmatprep.subr.mxu0 0.0
    %337 = vmatpush2.msra.mxu0 0.0
    %338 = vmatprep.subr.mxu0 0.0
    %339 = vmatpush2.msra.mxu0 0.0
    %340 = vmatprep.subr.mxu0 0.0
    %341 = vmatpush2.msra.mxu0 0.0
    %342 = vmatprep.subr.mxu0 0.0
    %343 = vmatpush2.msra.mxu0 0.0
    %344 = vmatprep.mubr.f32.mxu0 0.0
    %345 = vmatmul.mubr.f32.gmra.mxu0 %v279
    %v346 = vpop.f32.mrf.mxu0
    %v347 = vadd.f32 0.0, %v346
    %v348 = vpop.f32.mrf.mxu0
    %349 = vdwg.mxu0
    %s350 = scalar_lea.vmem [#allocation10], 8
    %351 = vst [vmem:[%s350] sm:$0xff] %v347
    %352 = vmatprep.subr.mxu0 0.0
    %353 = vmatpush1.msra.mxu0 %v86
    %354 = vmatprep.subr.mxu0 0.0
    %355 = vmatpush1.msra.mxu0 %v85
    %356 = vmatprep.subr.mxu0 0.0
    %357 = vmatpush1.msra.mxu0 %v84
    %358 = vmatprep.subr.mxu0 0.0
    %359 = vmatpush1.msra.mxu0 %v83
    %360 = vmatprep.subr.mxu0 0.0
    %361 = vmatpush1.msra.mxu0 %v82
    %362 = vmatprep.subr.mxu0 0.0
    %363 = vmatpush1.msra.mxu0 %v81
    %364 = vmatprep.subr.mxu0 0.0
    %365 = vmatpush1.msra.mxu0 %v80
    %366 = vmatprep.subr.mxu0 0.0
    %367 = vmatpush1.msra.mxu0 %v79
    %368 = vmatprep.subr.mxu0 0.0
    %369 = vmatpush1.msra.mxu0 %v78
    %370 = vmatprep.subr.mxu0 0.0
    %371 = vmatpush1.msra.mxu0 %v77
    %372 = vmatprep.subr.mxu0 0.0
    %373 = vmatpush1.msra.mxu0 %v76
    %374 = vmatprep.subr.mxu0 0.0
    %375 = vmatpush1.msra.mxu0 %v75
    %376 = vmatprep.subr.mxu0 0.0
    %377 = vmatpush1.msra.mxu0 %v74
    %378 = vmatprep.subr.mxu0 0.0
    %379 = vmatpush1.msra.mxu0 %v73
    %380 = vmatprep.subr.mxu0 0.0
    %381 = vmatpush1.msra.mxu0 %v72
    %382 = vmatprep.subr.mxu0 0.0
    %383 = vmatpush1.msra.mxu0 %v71
    %384 = vmatprep.subr.mxu0 0.0
    %385 = vmatpush2.msra.mxu0 0.0
    %386 = vmatprep.subr.mxu0 0.0
    %387 = vmatpush2.msra.mxu0 0.0
    %388 = vmatprep.subr.mxu0 0.0
    %389 = vmatpush2.msra.mxu0 0.0
    %390 = vmatprep.subr.mxu0 0.0
    %391 = vmatpush2.msra.mxu0 0.0
    %392 = vmatprep.subr.mxu0 0.0
    %393 = vmatpush2.msra.mxu0 0.0
    %394 = vmatprep.subr.mxu0 0.0
    %395 = vmatpush2.msra.mxu0 0.0
    %396 = vmatprep.subr.mxu0 0.0
    %397 = vmatpush2.msra.mxu0 0.0
    %398 = vmatprep.subr.mxu0 0.0
    %399 = vmatpush2.msra.mxu0 0.0
    %400 = vmatprep.subr.mxu0 0.0
    %401 = vmatpush2.msra.mxu0 0.0
    %402 = vmatprep.subr.mxu0 0.0
    %403 = vmatpush2.msra.mxu0 0.0
    %404 = vmatprep.subr.mxu0 0.0
    %405 = vmatpush2.msra.mxu0 0.0
    %406 = vmatprep.subr.mxu0 0.0
    %407 = vmatpush2.msra.mxu0 0.0
    %408 = vmatprep.subr.mxu0 0.0
    %409 = vmatpush2.msra.mxu0 0.0
    %410 = vmatprep.subr.mxu0 0.0
    %411 = vmatpush2.msra.mxu0 0.0
    %412 = vmatprep.subr.mxu0 0.0
    %413 = vmatpush2.msra.mxu0 0.0
    %414 = vmatprep.subr.mxu0 0.0
    %415 = vmatpush2.msra.mxu0 0.0
    %416 = vmatprep.mubr.f32.mxu0 0.0
    %417 = vmatmul.mubr.f32.gmra.mxu0 %v347
    %v418 = vpop.f32.mrf.mxu0
    %v419 = vadd.f32 %v70, %v418
    %v420 = vpop.f32.mrf.mxu0
    %421 = vdwg.mxu0
    %v422 = vsub.f32 0.0, %v419
    %v423 = vsub.f32 %v422, %v104
    %v424 = vmax.f32 %v423, 0.0
    %v425 = vmul.f32 %v107, %v424
    %v426 = vsub.f32 %v422, %v109
    %v427 = vmax.f32 %v426, 0.0
    %v428 = vmul.f32 %v112, %v427
    %v429 = vsub.f32 %v425, %v428
    %v430 = vsub.f32 %v419, %v109
    %v431 = vmax.f32 %v430, 0.0
    %v432 = vmul.f32 %v112, %v431
    %v433 = vadd.f32 %v429, %v432
    %v434 = vsub.f32 %v419, %v104
    %v435 = vmax.f32 %v434, 0.0
    %v436 = vmul.f32 %v107, %v435
    %v437 = vsub.f32 %v433, %v436
    %438 = vmatprep.subr.mxu0 0.0
    %439 = vmatpush1.msra.mxu0 %v102
    %440 = vmatprep.subr.mxu0 0.0
    %441 = vmatpush1.msra.mxu0 %v101
    %442 = vmatprep.subr.mxu0 0.0
    %443 = vmatpush1.msra.mxu0 %v100
    %444 = vmatprep.subr.mxu0 0.0
    %445 = vmatpush1.msra.mxu0 %v99
    %446 = vmatprep.subr.mxu0 0.0
    %447 = vmatpush1.msra.mxu0 %v98
    %448 = vmatprep.subr.mxu0 0.0
    %449 = vmatpush1.msra.mxu0 %v97
    %450 = vmatprep.subr.mxu0 0.0
    %451 = vmatpush1.msra.mxu0 %v96
    %452 = vmatprep.subr.mxu0 0.0
    %453 = vmatpush1.msra.mxu0 %v95
    %454 = vmatprep.subr.mxu0 0.0
    %455 = vmatpush1.msra.mxu0 %v94
    %456 = vmatprep.subr.mxu0 0.0
    %457 = vmatpush1.msra.mxu0 %v93
    %458 = vmatprep.subr.mxu0 0.0
    %459 = vmatpush1.msra.mxu0 %v92
    %460 = vmatprep.subr.mxu0 0.0
    %461 = vmatpush1.msra.mxu0 %v91
    %462 = vmatprep.subr.mxu0 0.0
    %463 = vmatpush1.msra.mxu0 %v90
    %464 = vmatprep.subr.mxu0 0.0
    %465 = vmatpush1.msra.mxu0 %v89
    %466 = vmatprep.subr.mxu0 0.0
    %467 = vmatpush1.msra.mxu0 %v88
    %468 = vmatprep.subr.mxu0 0.0
    %469 = vmatpush1.msra.mxu0 %v87
    %470 = vmatprep.subr.mxu0 0.0
    %471 = vmatpush2.msra.mxu0 0.0
    %472 = vmatprep.subr.mxu0 0.0
    %473 = vmatpush2.msra.mxu0 0.0
    %474 = vmatprep.subr.mxu0 0.0
    %475 = vmatpush2.msra.mxu0 0.0
    %476 = vmatprep.subr.mxu0 0.0
    %477 = vmatpush2.msra.mxu0 0.0
    %478 = vmatprep.subr.mxu0 0.0
    %479 = vmatpush2.msra.mxu0 0.0
    %480 = vmatprep.subr.mxu0 0.0
    %481 = vmatpush2.msra.mxu0 0.0
    %482 = vmatprep.subr.mxu0 0.0
    %483 = vmatpush2.msra.mxu0 0.0
    %484 = vmatprep.subr.mxu0 0.0
    %485 = vmatpush2.msra.mxu0 0.0
    %486 = vmatprep.subr.mxu0 0.0
    %487 = vmatpush2.msra.mxu0 0.0
    %488 = vmatprep.subr.mxu0 0.0
    %489 = vmatpush2.msra.mxu0 0.0
    %490 = vmatprep.subr.mxu0 0.0
    %491 = vmatpush2.msra.mxu0 0.0
    %492 = vmatprep.subr.mxu0 0.0
    %493 = vmatpush2.msra.mxu0 0.0
    %494 = vmatprep.subr.mxu0 0.0
    %495 = vmatpush2.msra.mxu0 0.0
    %496 = vmatprep.subr.mxu0 0.0
    %497 = vmatpush2.msra.mxu0 0.0
    %498 = vmatprep.subr.mxu0 0.0
    %499 = vmatpush2.msra.mxu0 0.0
    %500 = vmatprep.subr.mxu0 0.0
    %501 = vmatpush2.msra.mxu0 0.0
    %502 = vmatprep.mubr.f32.mxu0 0.0
    %503 = vmatmul.mubr.f32.gmra.mxu0 %v437
    %v504 = vpop.f32.mrf.mxu0
    %v505 = vadd.f32 0.0, %v504
    %v506 = vpop.f32.mrf.mxu0
    %507 = vdwg.mxu0
    %s508 = scalar_lea.vmem [#allocation10], 16
    %509 = vst [vmem:[%s508] sm:$0xff] %v505
    %510 = vmatprep.subr.mxu0 0.0
    %511 = vmatpush1.msra.mxu0 %v86
    %512 = vmatprep.subr.mxu0 0.0
    %513 = vmatpush1.msra.mxu0 %v85
    %514 = vmatprep.subr.mxu0 0.0
    %515 = vmatpush1.msra.mxu0 %v84
    %516 = vmatprep.subr.mxu0 0.0
    %517 = vmatpush1.msra.mxu0 %v83
    %518 = vmatprep.subr.mxu0 0.0
    %519 = vmatpush1.msra.mxu0 %v82
    %520 = vmatprep.subr.mxu0 0.0
    %521 = vmatpush1.msra.mxu0 %v81
    %522 = vmatprep.subr.mxu0 0.0
    %523 = vmatpush1.msra.mxu0 %v80
    %524 = vmatprep.subr.mxu0 0.0
    %525 = vmatpush1.msra.mxu0 %v79
    %526 = vmatprep.subr.mxu0 0.0
    %527 = vmatpush1.msra.mxu0 %v78
    %528 = vmatprep.subr.mxu0 0.0
    %529 = vmatpush1.msra.mxu0 %v77
    %530 = vmatprep.subr.mxu0 0.0
    %531 = vmatpush1.msra.mxu0 %v76
    %532 = vmatprep.subr.mxu0 0.0
    %533 = vmatpush1.msra.mxu0 %v75
    %534 = vmatprep.subr.mxu0 0.0
    %535 = vmatpush1.msra.mxu0 %v74
    %536 = vmatprep.subr.mxu0 0.0
    %537 = vmatpush1.msra.mxu0 %v73
    %538 = vmatprep.subr.mxu0 0.0
    %539 = vmatpush1.msra.mxu0 %v72
    %540 = vmatprep.subr.mxu0 0.0
    %541 = vmatpush1.msra.mxu0 %v71
    %542 = vmatprep.subr.mxu0 0.0
    %543 = vmatpush2.msra.mxu0 0.0
    %544 = vmatprep.subr.mxu0 0.0
    %545 = vmatpush2.msra.mxu0 0.0
    %546 = vmatprep.subr.mxu0 0.0
    %547 = vmatpush2.msra.mxu0 0.0
    %548 = vmatprep.subr.mxu0 0.0
    %549 = vmatpush2.msra.mxu0 0.0
    %550 = vmatprep.subr.mxu0 0.0
    %551 = vmatpush2.msra.mxu0 0.0
    %552 = vmatprep.subr.mxu0 0.0
    %553 = vmatpush2.msra.mxu0 0.0
    %554 = vmatprep.subr.mxu0 0.0
    %555 = vmatpush2.msra.mxu0 0.0
    %556 = vmatprep.subr.mxu0 0.0
    %557 = vmatpush2.msra.mxu0 0.0
    %558 = vmatprep.subr.mxu0 0.0
    %559 = vmatpush2.msra.mxu0 0.0
    %560 = vmatprep.subr.mxu0 0.0
    %561 = vmatpush2.msra.mxu0 0.0
    %562 = vmatprep.subr.mxu0 0.0
    %563 = vmatpush2.msra.mxu0 0.0
    %564 = vmatprep.subr.mxu0 0.0
    %565 = vmatpush2.msra.mxu0 0.0
    %566 = vmatprep.subr.mxu0 0.0
    %567 = vmatpush2.msra.mxu0 0.0
    %568 = vmatprep.subr.mxu0 0.0
    %569 = vmatpush2.msra.mxu0 0.0
    %570 = vmatprep.subr.mxu0 0.0
    %571 = vmatpush2.msra.mxu0 0.0
    %572 = vmatprep.subr.mxu0 0.0
    %573 = vmatpush2.msra.mxu0 0.0
    %574 = vmatprep.mubr.f32.mxu0 0.0
    %575 = vmatmul.mubr.f32.gmra.mxu0 %v505
    %v576 = vpop.f32.mrf.mxu0
    %v577 = vadd.f32 %v70, %v576
    %v578 = vpop.f32.mrf.mxu0
    %579 = vdwg.mxu0
    %v580 = vsub.f32 0.0, %v577
    %v581 = vsub.f32 %v580, %v104
    %v582 = vmax.f32 %v581, 0.0
    %v583 = vmul.f32 %v107, %v582
    %v584 = vsub.f32 %v580, %v109
    %v585 = vmax.f32 %v584, 0.0
    %v586 = vmul.f32 %v112, %v585
    %v587 = vsub.f32 %v583, %v586
    %v588 = vsub.f32 %v577, %v109
    %v589 = vmax.f32 %v588, 0.0
    %v590 = vmul.f32 %v112, %v589
    %v591 = vadd.f32 %v587, %v590
    %v592 = vsub.f32 %v577, %v104
    %v593 = vmax.f32 %v592, 0.0
    %v594 = vmul.f32 %v107, %v593
    %v595 = vsub.f32 %v591, %v594
    %596 = vmatprep.subr.mxu0 0.0
    %597 = vmatpush1.msra.mxu0 %v102
    %598 = vmatprep.subr.mxu0 0.0
    %599 = vmatpush1.msra.mxu0 %v101
    %600 = vmatprep.subr.mxu0 0.0
    %601 = vmatpush1.msra.mxu0 %v100
    %602 = vmatprep.subr.mxu0 0.0
    %603 = vmatpush1.msra.mxu0 %v99
    %604 = vmatprep.subr.mxu0 0.0
    %605 = vmatpush1.msra.mxu0 %v98
    %606 = vmatprep.subr.mxu0 0.0
    %607 = vmatpush1.msra.mxu0 %v97
    %608 = vmatprep.subr.mxu0 0.0
    %609 = vmatpush1.msra.mxu0 %v96
    %610 = vmatprep.subr.mxu0 0.0
    %611 = vmatpush1.msra.mxu0 %v95
    %612 = vmatprep.subr.mxu0 0.0
    %613 = vmatpush1.msra.mxu0 %v94
    %614 = vmatprep.subr.mxu0 0.0
    %615 = vmatpush1.msra.mxu0 %v93
    %616 = vmatprep.subr.mxu0 0.0
    %617 = vmatpush1.msra.mxu0 %v92
    %618 = vmatprep.subr.mxu0 0.0
    %619 = vmatpush1.msra.mxu0 %v91
    %620 = vmatprep.subr.mxu0 0.0
    %621 = vmatpush1.msra.mxu0 %v90
    %622 = vmatprep.subr.mxu0 0.0
    %623 = vmatpush1.msra.mxu0 %v89
    %624 = vmatprep.subr.mxu0 0.0
    %625 = vmatpush1.msra.mxu0 %v88
    %626 = vmatprep.subr.mxu0 0.0
    %627 = vmatpush1.msra.mxu0 %v87
    %628 = vmatprep.subr.mxu0 0.0
    %629 = vmatpush2.msra.mxu0 0.0
    %630 = vmatprep.subr.mxu0 0.0
    %631 = vmatpush2.msra.mxu0 0.0
    %632 = vmatprep.subr.mxu0 0.0
    %633 = vmatpush2.msra.mxu0 0.0
    %634 = vmatprep.subr.mxu0 0.0
    %635 = vmatpush2.msra.mxu0 0.0
    %636 = vmatprep.subr.mxu0 0.0
    %637 = vmatpush2.msra.mxu0 0.0
    %638 = vmatprep.subr.mxu0 0.0
    %639 = vmatpush2.msra.mxu0 0.0
    %640 = vmatprep.subr.mxu0 0.0
    %641 = vmatpush2.msra.mxu0 0.0
    %642 = vmatprep.subr.mxu0 0.0
    %643 = vmatpush2.msra.mxu0 0.0
    %644 = vmatprep.subr.mxu0 0.0
    %645 = vmatpush2.msra.mxu0 0.0
    %646 = vmatprep.subr.mxu0 0.0
    %647 = vmatpush2.msra.mxu0 0.0
    %648 = vmatprep.subr.mxu0 0.0
    %649 = vmatpush2.msra.mxu0 0.0
    %650 = vmatprep.subr.mxu0 0.0
    %651 = vmatpush2.msra.mxu0 0.0
    %652 = vmatprep.subr.mxu0 0.0
    %653 = vmatpush2.msra.mxu0 0.0
    %654 = vmatprep.subr.mxu0 0.0
    %655 = vmatpush2.msra.mxu0 0.0
    %656 = vmatprep.subr.mxu0 0.0
    %657 = vmatpush2.msra.mxu0 0.0
    %658 = vmatprep.subr.mxu0 0.0
    %659 = vmatpush2.msra.mxu0 0.0
    %660 = vmatprep.mubr.f32.mxu0 0.0
    %661 = vmatmul.mubr.f32.gmra.mxu0 %v595
    %v662 = vpop.f32.mrf.mxu0
    %v663 = vadd.f32 0.0, %v662
    %v664 = vpop.f32.mrf.mxu0
    %665 = vdwg.mxu0
    %s666 = scalar_lea.vmem [#allocation10], 24
    %667 = vst [vmem:[%s666] sm:$0xff] %v663
    %668 = vmatprep.subr.mxu0 0.0
    %669 = vmatpush1.msra.mxu0 %v86
    %670 = vmatprep.subr.mxu0 0.0
    %671 = vmatpush1.msra.mxu0 %v85
    %672 = vmatprep.subr.mxu0 0.0
    %673 = vmatpush1.msra.mxu0 %v84
    %674 = vmatprep.subr.mxu0 0.0
    %675 = vmatpush1.msra.mxu0 %v83
    %676 = vmatprep.subr.mxu0 0.0
    %677 = vmatpush1.msra.mxu0 %v82
    %678 = vmatprep.subr.mxu0 0.0
    %679 = vmatpush1.msra.mxu0 %v81
    %680 = vmatprep.subr.mxu0 0.0
    %681 = vmatpush1.msra.mxu0 %v80
    %682 = vmatprep.subr.mxu0 0.0
    %683 = vmatpush1.msra.mxu0 %v79
    %684 = vmatprep.subr.mxu0 0.0
    %685 = vmatpush1.msra.mxu0 %v78
    %686 = vmatprep.subr.mxu0 0.0
    %687 = vmatpush1.msra.mxu0 %v77
    %688 = vmatprep.subr.mxu0 0.0
    %689 = vmatpush1.msra.mxu0 %v76
    %690 = vmatprep.subr.mxu0 0.0
    %691 = vmatpush1.msra.mxu0 %v75
    %692 = vmatprep.subr.mxu0 0.0
    %693 = vmatpush1.msra.mxu0 %v74
    %694 = vmatprep.subr.mxu0 0.0
    %695 = vmatpush1.msra.mxu0 %v73
    %696 = vmatprep.subr.mxu0 0.0
    %697 = vmatpush1.msra.mxu0 %v72
    %698 = vmatprep.subr.mxu0 0.0
    %699 = vmatpush1.msra.mxu0 %v71
    %700 = vmatprep.subr.mxu0 0.0
    %701 = vmatpush2.msra.mxu0 0.0
    %702 = vmatprep.subr.mxu0 0.0
    %703 = vmatpush2.msra.mxu0 0.0
    %704 = vmatprep.subr.mxu0 0.0
    %705 = vmatpush2.msra.mxu0 0.0
    %706 = vmatprep.subr.mxu0 0.0
    %707 = vmatpush2.msra.mxu0 0.0
    %708 = vmatprep.subr.mxu0 0.0
    %709 = vmatpush2.msra.mxu0 0.0
    %710 = vmatprep.subr.mxu0 0.0
    %711 = vmatpush2.msra.mxu0 0.0
    %712 = vmatprep.subr.mxu0 0.0
    %713 = vmatpush2.msra.mxu0 0.0
    %714 = vmatprep.subr.mxu0 0.0
    %715 = vmatpush2.msra.mxu0 0.0
    %716 = vmatprep.subr.mxu0 0.0
    %717 = vmatpush2.msra.mxu0 0.0
    %718 = vmatprep.subr.mxu0 0.0
    %719 = vmatpush2.msra.mxu0 0.0
    %720 = vmatprep.subr.mxu0 0.0
    %721 = vmatpush2.msra.mxu0 0.0
    %722 = vmatprep.subr.mxu0 0.0
    %723 = vmatpush2.msra.mxu0 0.0
    %724 = vmatprep.subr.mxu0 0.0
    %725 = vmatpush2.msra.mxu0 0.0
    %726 = vmatprep.subr.mxu0 0.0
    %727 = vmatpush2.msra.mxu0 0.0
    %728 = vmatprep.subr.mxu0 0.0
    %729 = vmatpush2.msra.mxu0 0.0
    %730 = vmatprep.subr.mxu0 0.0
    %731 = vmatpush2.msra.mxu0 0.0
    %732 = vmatprep.mubr.f32.mxu0 0.0
    %733 = vmatmul.mubr.f32.gmra.mxu0 %v663
    %v734 = vpop.f32.mrf.mxu0
    %v735 = vadd.f32 %v70, %v734
    %v736 = vpop.f32.mrf.mxu0
    %737 = vdwg.mxu0
    %v738 = vsub.f32 0.0, %v735
    %v739 = vsub.f32 %v738, %v104
    %v740 = vmax.f32 %v739, 0.0
    %v741 = vmul.f32 %v107, %v740
    %v742 = vsub.f32 %v738, %v109
    %v743 = vmax.f32 %v742, 0.0
    %v744 = vmul.f32 %v112, %v743
    %v745 = vsub.f32 %v741, %v744
    %v746 = vsub.f32 %v735, %v109
    %v747 = vmax.f32 %v746, 0.0
    %v748 = vmul.f32 %v112, %v747
    %v749 = vadd.f32 %v745, %v748
    %v750 = vsub.f32 %v735, %v104
    %v751 = vmax.f32 %v750, 0.0
    %v752 = vmul.f32 %v107, %v751
    %v753 = vsub.f32 %v749, %v752
    %754 = vmatprep.subr.mxu0 0.0
    %755 = vmatpush1.msra.mxu0 %v102
    %756 = vmatprep.subr.mxu0 0.0
    %757 = vmatpush1.msra.mxu0 %v101
    %758 = vmatprep.subr.mxu0 0.0
    %759 = vmatpush1.msra.mxu0 %v100
    %760 = vmatprep.subr.mxu0 0.0
    %761 = vmatpush1.msra.mxu0 %v99
    %762 = vmatprep.subr.mxu0 0.0
    %763 = vmatpush1.msra.mxu0 %v98
    %764 = vmatprep.subr.mxu0 0.0
    %765 = vmatpush1.msra.mxu0 %v97
    %766 = vmatprep.subr.mxu0 0.0
    %767 = vmatpush1.msra.mxu0 %v96
    %768 = vmatprep.subr.mxu0 0.0
    %769 = vmatpush1.msra.mxu0 %v95
    %770 = vmatprep.subr.mxu0 0.0
    %771 = vmatpush1.msra.mxu0 %v94
    %772 = vmatprep.subr.mxu0 0.0
    %773 = vmatpush1.msra.mxu0 %v93
    %774 = vmatprep.subr.mxu0 0.0
    %775 = vmatpush1.msra.mxu0 %v92
    %776 = vmatprep.subr.mxu0 0.0
    %777 = vmatpush1.msra.mxu0 %v91
    %778 = vmatprep.subr.mxu0 0.0
    %779 = vmatpush1.msra.mxu0 %v90
    %780 = vmatprep.subr.mxu0 0.0
    %781 = vmatpush1.msra.mxu0 %v89
    %782 = vmatprep.subr.mxu0 0.0
    %783 = vmatpush1.msra.mxu0 %v88
    %784 = vmatprep.subr.mxu0 0.0
    %785 = vmatpush1.msra.mxu0 %v87
    %786 = vmatprep.subr.mxu0 0.0
    %787 = vmatpush2.msra.mxu0 0.0
    %788 = vmatprep.subr.mxu0 0.0
    %789 = vmatpush2.msra.mxu0 0.0
    %790 = vmatprep.subr.mxu0 0.0
    %791 = vmatpush2.msra.mxu0 0.0
    %792 = vmatprep.subr.mxu0 0.0
    %793 = vmatpush2.msra.mxu0 0.0
    %794 = vmatprep.subr.mxu0 0.0
    %795 = vmatpush2.msra.mxu0 0.0
    %796 = vmatprep.subr.mxu0 0.0
    %797 = vmatpush2.msra.mxu0 0.0
    %798 = vmatprep.subr.mxu0 0.0
    %799 = vmatpush2.msra.mxu0 0.0
    %800 = vmatprep.subr.mxu0 0.0
    %801 = vmatpush2.msra.mxu0 0.0
    %802 = vmatprep.subr.mxu0 0.0
    %803 = vmatpush2.msra.mxu0 0.0
    %804 = vmatprep.subr.mxu0 0.0
    %805 = vmatpush2.msra.mxu0 0.0
    %806 = vmatprep.subr.mxu0 0.0
    %807 = vmatpush2.msra.mxu0 0.0
    %808 = vmatprep.subr.mxu0 0.0
    %809 = vmatpush2.msra.mxu0 0.0
    %810 = vmatprep.subr.mxu0 0.0
    %811 = vmatpush2.msra.mxu0 0.0
    %812 = vmatprep.subr.mxu0 0.0
    %813 = vmatpush2.msra.mxu0 0.0
    %814 = vmatprep.subr.mxu0 0.0
    %815 = vmatpush2.msra.mxu0 0.0
    %816 = vmatprep.subr.mxu0 0.0
    %817 = vmatpush2.msra.mxu0 0.0
    %818 = vmatprep.mubr.f32.mxu0 0.0
    %819 = vmatmul.mubr.f32.gmra.mxu0 %v753
    %v820 = vpop.f32.mrf.mxu0
    %v821 = vadd.f32 0.0, %v820
    %v822 = vpop.f32.mrf.mxu0
    %823 = vdwg.mxu0
    %s824 = scalar_lea.vmem [#allocation10], 32
    %825 = vst [vmem:[%s824] sm:$0xff] %v821
    // Predicated region
    $region34: #{tpu_custom_call.1} parent=1 // pred_check
      _
    $region35: #{tpu_custom_call.1} parent=1 // pred_check_branch
      %827 = sbr.rel (0) target = $region37
    $region36: #{tpu_custom_call.1} parent=1 // pred_region
      %s829 = ssub.s32 640, 640
      %830 = vsyncadd [#allocation6], %s829
      %s831 = sshll.u32 [#allocation10], 4
      %s832 = int_to_ptr.vmem [resolvable:$true] %s831
      %837 = dma.vmem_to_hbm [thread:$0]  %s832, 640, %s5, [#allocation6], 128, 128, 8
    $region37: #{tpu_custom_call.1} parent=1 // pred_fallthru
      _
    // Predicated region
    $region38: #{tpu_custom_call.1} parent=1 // pred_check
      _
    $region39: #{tpu_custom_call.1} parent=1 // pred_check_branch
      %839 = sbr.rel (0) target = $region41
    $region40: #{tpu_custom_call.1} parent=1 // pred_region
      %840 = dma.done [#allocation6], 640
    $region41: #{tpu_custom_call.1} parent=1 // pred_fallthru
      _
    %841 = vsyncpa [#allocation5], 1
    %842 = vsyncpa [#allocation8], 1
    %843 = vsyncpa [#allocation6], 1

</llo_original>
